<compile_context>
chip_gen: v5e
topology: v5e:2x2
jax: 0.10.0
libtpu: 0.0.40
codegen_flags: <defaults>
</compile_context>

<pallas_src>
import functools

import jax
import jax.numpy as jnp
from jax.experimental import pallas as pl
from jax.experimental.pallas import tpu as pltpu


def _rmsnorm_kernel(x_ref, w_ref, o_ref, *, eps: float, d_model: int):
    # x_ref: (tm, D) tile of rows; w_ref: (1, D) scale weight.
    xf = x_ref[...].astype(jnp.float32)                              # (tm, D)
    # sum(x*x) * (1/D) is cheaper than jnp.mean; rsqrt goes to the EUP slot.
    ms = jnp.sum(xf * xf, axis=-1, keepdims=True) * (1.0 / d_model)  # (tm, 1)
    inv = jax.lax.rsqrt(ms + eps)                                    # (tm, 1)
    w = w_ref[...].astype(jnp.float32)                               # (1, D)
    # Re-read x (already resident in VMEM) so the first f32 copy need not
    # stay live across the reduction barrier -> lower peak VMEM scratch.
    x2 = x_ref[...].astype(jnp.float32)
    o_ref[...] = ((x2 * inv) * w).astype(o_ref.dtype)


def _round_up(v: int, m: int) -> int:
    return -(-v // m) * m


def _vmem_capacity_bytes():
    try:
        return int(pltpu.get_tpu_info().vmem_capacity_bytes)
    except Exception:
        return None


def _sizing_for_generation():
    """(target_block_bytes, vmem_limit_bytes) based on physical VMEM."""
    cap = _vmem_capacity_bytes()
    if cap is None:
        # Unknown generation: conservative sizing (safe on v7x's 64 MiB VMEM,
        # still ~85% of HBM roofline everywhere).
        return 2 * 1024 * 1024, 32 * 1024 * 1024
    if cap <= 64 * 1024 * 1024:
        # v7x-class: 64 MiB VMEM per TensorCore.
        return 2 * 1024 * 1024, min(32 * 1024 * 1024, cap // 2)
    # v5e / v6e: 128 MiB physical VMEM; 4 MiB blocks sit on the flat part of
    # the roofline curve. The explicit 48 MiB limit is load-bearing on v5e
    # (default scoped limit is only 16 MiB).
    return 4 * 1024 * 1024, 48 * 1024 * 1024


def _choose_row_tile(rows: int, d_model: int, dtype_bytes: int,
                     target_block_bytes: int) -> int:
    """Row tile: multiple of the packed sublane tile, ~target bytes, <=1024."""
    # Native sublane tile: 8 rows for 32-bit, 16 for bf16, 32 for int8/fp8.
    sub = max(8, 32 // max(dtype_bytes, 1))

    tm = max(sub, target_block_bytes // max(d_model * dtype_bytes, 1))
    tm = min(int(tm), 1024)
    tm = max((tm // sub) * sub, sub)
    # Never tile larger than the (sublane-padded) row count.
    tm = min(tm, _round_up(rows, sub))

    # Prefer >= 4 grid steps (>= 2 per v7x TensorCore) when there is enough
    # work, so prologue/epilogue DMAs stay hidden behind the pipeline.
    min_steps = 4
    if rows > min_steps * sub and pl.cdiv(rows, tm) < min_steps:
        tm = max(_round_up(pl.cdiv(rows, min_steps), sub), sub)

    # Prefer an even grid so both v7x TensorCores get equal work (harmless on
    # single-TC v5e/v6e); only adopt the smaller tile if it actually lands on
    # an even step count.
    steps = pl.cdiv(rows, tm)
    if steps > 1 and steps % 2 == 1:
        tm2 = max(_round_up(pl.cdiv(rows, steps + 1), sub), sub)
        if pl.cdiv(rows, tm2) % 2 == 0:
            tm = tm2
    return tm


def rmsnorm(x: jax.Array, weight: jax.Array, eps: float = 1e-8) -> jax.Array:
    """RMSNorm over the last axis of x, scaled by `weight` (shape (d_model,))."""
    orig_shape = x.shape
    d_model = orig_shape[-1]
    assert weight.shape == (d_model,)

    x2d = x.reshape(-1, d_model)
    rows = x2d.shape[0]
    dtype_bytes = jnp.dtype(x.dtype).itemsize

    target_block_bytes, vmem_limit_bytes = _sizing_for_generation()
    tm = _choose_row_tile(rows, d_model, dtype_bytes, target_block_bytes)
    grid = pl.cdiv(rows, tm)  # ragged last block handled by Pallas; no jnp.pad

    # Rough guard: double-buffered in/out blocks + f32 temps must fit the
    # scoped VMEM limit even at the minimum row tile.
    # TODO(synk): tile the d_model axis (two-pass reduction) for huge D.
    min_block_bytes = max(8, 32 // max(dtype_bytes, 1)) * d_model * max(dtype_bytes, 4)
    assert min_block_bytes * 6 <= vmem_limit_bytes, (
        "d_model too large for single-axis row tiling")

    w2d = weight.reshape(1, d_model)

    # TODO(synk): for d_model < 128 (e.g. the 32-wide demo) stores are masked
    # partial vst's; a lane-dense repack (g = 128 // d_model rows per slab)
    # would help, but production d_model % 128 == 0 gets the fast path as-is.
    out = pl.pallas_call(
        functools.partial(_rmsnorm_kernel, eps=eps, d_model=d_model),
        out_shape=jax.ShapeDtypeStruct((rows, d_model), x.dtype),
        grid_spec=pltpu.PrefetchScalarGridSpec(
            num_scalar_prefetch=0,
            grid=(grid,),
            in_specs=[
                pl.BlockSpec((tm, d_model), lambda i: (i, 0)),
                pl.BlockSpec((1, d_model), lambda i: (0, 0)),
            ],
            out_specs=pl.BlockSpec((tm, d_model), lambda i: (i, 0)),
        ),
        compiler_params=pltpu.CompilerParams(
            dimension_semantics=("parallel",),
            vmem_limit_bytes=vmem_limit_bytes,
        ),
    )(x2d, w2d)

    return out.reshape(orig_shape)


def rmsnorm_ref(x, weight, eps=1e-8):
    xf = x.astype(jnp.float32)
    ms = jnp.mean(xf * xf, axis=-1, keepdims=True)
    return (xf * jax.lax.rsqrt(ms + eps) * weight.astype(jnp.float32)).astype(x.dtype)


if __name__ == "__main__":
    key = jax.random.PRNGKey(0)
    k1, k2, k3 = jax.random.split(key, 3)

    # (batch, seq, d_model) consistent with the module usage.
    batch, seq, d_model = 2, 8, 32
    x = jax.random.normal(k1, (batch, seq, d_model), dtype=jnp.float32)
    weight = jnp.ones((d_model,), dtype=jnp.float32)  # nn.Parameter(torch.ones(d))

    out = jax.block_until_ready(rmsnorm(x, weight, eps=1e-8))
    ref = rmsnorm_ref(x, weight, eps=1e-8)
    assert out.shape == x.shape
    assert jnp.allclose(out, ref, atol=1e-5, rtol=1e-5)

    # Ragged row count (21 rows): exercises the no-pad edge-block path.
    x2 = jax.random.normal(k2, (3, 7, d_model), dtype=jnp.float32)
    w2 = jnp.linspace(0.5, 1.5, d_model, dtype=jnp.float32)
    out2 = jax.block_until_ready(rmsnorm(x2, w2, eps=1e-8))
    ref2 = rmsnorm_ref(x2, w2, eps=1e-8)
    assert out2.shape == x2.shape
    assert jnp.allclose(out2, ref2, atol=1e-5, rtol=1e-5)

    # bf16 smoke test: exercises the packed-sublane (16-row) tile alignment.
    x3 = jax.random.normal(k3, (batch, seq, d_model), dtype=jnp.float32).astype(jnp.bfloat16)
    out3 = jax.block_until_ready(rmsnorm(x3, weight, eps=1e-8))
    ref3 = rmsnorm_ref(x3, weight, eps=1e-8)
    assert out3.shape == x3.shape
    assert jnp.allclose(out3.astype(jnp.float32), ref3.astype(jnp.float32),
                        atol=3e-2, rtol=3e-2)

    print("KERNEL_OK")
</pallas_src>

<mosaic_0001>
module attributes {stable_mosaic.version = 11 : i64} {
  func.func @_rmsnorm_kernel(%arg0: i32, %arg1: memref<16x32xf32, #tpu.memory_space<vmem>>, %arg2: memref<1x32xf32, #tpu.memory_space<vmem>>, %arg3: memref<16x32xf32, #tpu.memory_space<vmem>>) attributes {dimension_semantics = [#tpu.dimension_semantics<parallel>], iteration_bounds = array<i64: 1>, scalar_prefetch = 0 : i64, scratch_operands = 0 : i64, tpu.core_type = #tpu.core_type<tc>, window_params = [{transform_indices = @transform_0, window_bounds = array<i64: 16, 32>}, {pipeline_mode = #tpu.pipeline_mode<synchronous>, transform_indices = @transform_1, window_bounds = array<i64: 1, 32>}, {transform_indices = @transform_2, window_bounds = array<i64: 16, 32>}]} {
    %c0 = arith.constant 0 : index
    %c0_0 = arith.constant 0 : index
    %0 = vector.load %arg1[%c0, %c0_0] : memref<16x32xf32, #tpu.memory_space<vmem>>, vector<16x32xf32>
    %1 = arith.mulf %0, %0 : vector<16x32xf32>
    %cst = arith.constant dense<0.000000e+00> : vector<16xf32>
    %2 = vector.multi_reduction <add>, %1, %cst [1] : vector<16x32xf32> to vector<16xf32>
    %3 = vector.shape_cast %2 : vector<16xf32> to vector<16x1xf32>
    %cst_1 = arith.constant 3.125000e-02 : f32
    %4 = vector.broadcast %cst_1 : f32 to vector<16x1xf32>
    %5 = arith.mulf %3, %4 : vector<16x1xf32>
    %cst_2 = arith.constant 9.99999993E-9 : f32
    %6 = vector.broadcast %cst_2 : f32 to vector<16x1xf32>
    %7 = arith.addf %5, %6 : vector<16x1xf32>
    %8 = math.rsqrt %7 : vector<16x1xf32>
    %c0_3 = arith.constant 0 : index
    %c0_4 = arith.constant 0 : index
    %9 = vector.load %arg2[%c0_3, %c0_4] : memref<1x32xf32, #tpu.memory_space<vmem>>, vector<1x32xf32>
    %c0_5 = arith.constant 0 : index
    %c0_6 = arith.constant 0 : index
    %10 = vector.load %arg1[%c0_5, %c0_6] : memref<16x32xf32, #tpu.memory_space<vmem>>, vector<16x32xf32>
    %11 = vector.broadcast %8 : vector<16x1xf32> to vector<16x32xf32>
    %12 = arith.mulf %10, %11 : vector<16x32xf32>
    %13 = vector.broadcast %9 : vector<1x32xf32> to vector<16x32xf32>
    %14 = arith.mulf %12, %13 : vector<16x32xf32>
    %c0_7 = arith.constant 0 : index
    %c0_8 = arith.constant 0 : index
    %15 = vector.load %arg3[%c0_7, %c0_8] : memref<16x32xf32, #tpu.memory_space<vmem>>, vector<16x32xf32>
    tpu.vector_store %arg3[%c0_7, %c0_8], %14 {strides = array<i32>} : memref<16x32xf32, #tpu.memory_space<vmem>>, vector<16x32xf32>,
    return
  }
  func.func @transform_0(%arg0: i32) -> (i32, i32) {
    %c0_i32 = arith.constant 0 : i32
    %c0_i32_0 = arith.constant 0 : i32
    return %arg0, %c0_i32 : i32, i32
  }
  func.func @transform_1(%arg0: i32) -> (i32, i32) {
    %c0_i32 = arith.constant 0 : i32
    %c0_i32_0 = arith.constant 0 : i32
    %c0_i32_1 = arith.constant 0 : i32
    return %c0_i32, %c0_i32_0 : i32, i32
  }
  func.func @transform_2(%arg0: i32) -> (i32, i32) {
    %c0_i32 = arith.constant 0 : i32
    %c0_i32_0 = arith.constant 0 : i32
    return %arg0, %c0_i32 : i32, i32
  }
}

</mosaic_0001>

<llo_original>
// kernel: tpu_custom_call.1
$region0: #{tpu_custom_call.1}
  #allocation0 [shape = 'u32[]', space=smem, size = 0x4, offset = 0x4, fixed_abs, tag = 'smem constant byte address 0x4 - core index']
  #allocation1 [shape = 'u32[72,128]{1,0:T(1,128)}', space=vmem, size = 0x9000, scoped, tag = 'internal scratch']
  %s0 = inlined_call_operand.hbm [shape: f32[16,32], index: 0, kind: input, shape index: {}]
  %s1 = inlined_call_operand.hbm [shape: f32[1,32], index: 1, kind: input, shape index: {}]
  %s2 = inlined_call_operand.hbm [shape: f32[16,32], index: 2, kind: output, shape index: {}]
  %s3 = sld [smem:[#allocation0]]
  $region26: #{tpu_custom_call.1} parent=0
    _
  %s5 = ssub.s32 1, %s3
  %s6 = scalar_select 0, %s5, %s3
  $region1: #{tpu_custom_call.1} parent=0
    #allocation2 [shape = 'u8[8192]{0}', space=vmem, size = 0x2000, scoped, tag = 'input window, operand 0, single buffered']
    #allocation3 [shape = 's32[1]{0}', space=sflag, size = 0x4, scoped, tag = 'scoped memory for tpu_custom_call.1']
    #allocation4 [shape = 's32[1]{0}', space=sflag, size = 0x4, scoped, tag = 'scoped memory for tpu_custom_call.1']
    #allocation5 [shape = 'u8[512]{0}', space=vmem, size = 0x400, scoped, tag = 'input window, operand 1, single buffered']
    #allocation6 [shape = 's32[1]{0}', space=sflag, size = 0x4, scoped, tag = 'scoped memory for tpu_custom_call.1']
    #allocation7 [shape = 'u8[8192]{0}', space=vmem, size = 0x2000, scoped, tag = 'output window, operand 0, single buffered']
    %7 = vsyncpa [#allocation3], 0
    %8 = vsyncpa [#allocation6], 0
    %9 = vsyncpa [#allocation4], 0
    // Predicated region
    $region2: #{tpu_custom_call.1} parent=1 // pred_check
      _
    $region3: #{tpu_custom_call.1} parent=1 // pred_check_branch
      %11 = sbr.rel (0) target = $region5
    $region4: #{tpu_custom_call.1} parent=1 // pred_region
      %13 = vsyncadd [#allocation3], 0
      %s14 = sshll.u32 %s0, 4
      %s15 = int_to_ptr.hbm [resolvable:$true] %s14
      %s16 = sshll.u32 [#allocation2], 4
      %s17 = int_to_ptr.vmem [resolvable:$true] %s16
      %22 = dma.hbm_to_vmem [thread:$0]  %s15, 256, %s17, [#allocation3], 128, 128, 8
    $region5: #{tpu_custom_call.1} parent=1 // pred_fallthru
      _
    // Predicated region
    $region6: #{tpu_custom_call.1} parent=1 // pred_check
      _
    $region7: #{tpu_custom_call.1} parent=1 // pred_check_branch
      %24 = sbr.rel (0) target = $region9
    $region8: #{tpu_custom_call.1} parent=1 // pred_region
      %26 = vsyncadd [#allocation6], 0
      %s28 = sshll.u32 %s1, 4
      %s29 = int_to_ptr.hbm [resolvable:$true] %s28
      %s30 = sshll.u32 [#allocation5], 4
      %s31 = int_to_ptr.vmem [resolvable:$true] %s30
      %33 = dma.hbm_to_vmem [thread:$0]  %s29, 16, %s31, [#allocation6]
    $region9: #{tpu_custom_call.1} parent=1 // pred_fallthru
      _
    // Predicated region
    $region10: #{tpu_custom_call.1} parent=1 // pred_check
      _
    $region11: #{tpu_custom_call.1} parent=1 // pred_check_branch
      %35 = sbr.rel (0) target = $region13
    $region12: #{tpu_custom_call.1} parent=1 // pred_region
      %37 = dma.done [#allocation3], 256
    $region13: #{tpu_custom_call.1} parent=1 // pred_fallthru
      _
    // Predicated region
    $region14: #{tpu_custom_call.1} parent=1 // pred_check
      _
    $region15: #{tpu_custom_call.1} parent=1 // pred_check_branch
      %39 = sbr.rel (0) target = $region17
    $region16: #{tpu_custom_call.1} parent=1 // pred_region
      %41 = dma.done [#allocation6], 16
    $region17: #{tpu_custom_call.1} parent=1 // pred_fallthru
      _
    %v42 = vld [vmem:[#allocation2] sm:$0xff]
    %v43 = vld [vmem:[#allocation2 + $0x8] sm:$0xff]
    %v44 = vmul.f32 %v42, %v42
    %v45 = vmul.f32 %v43, %v43
    %vm46 = vcmask 261120
    %v47 = vsel %vm46, %v44, 0.0
    %48 = vadd.xlane.f32.xlu0 %v47
    %v49 = vpop.xlane.xlu0 %48
    %v50 = vsel %vm46, %v45, 0.0
    %51 = vadd.xlane.f32.xlu0 %v50
    %v52 = vpop.xlane.xlu0 %51
    %v53 = vmul.f32 %v49, 0.03125
    %v54 = vmul.f32 %v52, 0.03125
    %v55 = vadd.f32 %v53, 1e-08
    %v56 = vadd.f32 %v54, 1e-08
    %v57 = vrsqrt.pop %v55
    %v58 = vmul.f32 %v57, %v55
    %v59 = vmul.f32 %v58, %v57
    %v60 = vmul.f32 0.5, %v59
    %v61 = vsub.f32 1.5, %v60
    %v62 = vmul.f32 %v57, %v61
    %vm63 = vweird.f32 %v55
    %vm64 = vweird.f32 %v57
    %vm65 = vmor %vm63, %vm64
    %v66 = vsel %vm65, %v57, %v62
    %v67 = vrsqrt.pop %v56
    %v68 = vmul.f32 %v67, %v56
    %v69 = vmul.f32 %v68, %v67
    %v70 = vmul.f32 0.5, %v69
    %v71 = vsub.f32 1.5, %v70
    %v72 = vmul.f32 %v67, %v71
    %vm73 = vweird.f32 %v56
    %vm74 = vweird.f32 %v67
    %vm75 = vmor %vm73, %vm74
    %v76 = vsel %vm75, %v67, %v72
    %v77 = vld [vmem:[#allocation5] sm:$0x1]
    %v78 = vmul.f32 %v42, %v66
    %v79 = vmul.f32 %v43, %v76
    %v81 = vperm.slane %v77, 0
    %v83 = vmul.f32 %v78, %v81
    %v84 = vmul.f32 %v79, %v81
    %85 = vst.msk [vmem:[#allocation7] sm:$0xff] %vm46, %v83
    %86 = vst.msk [vmem:[#allocation7 + $0x8] sm:$0xff] %vm46, %v84
    // Predicated region
    $region18: #{tpu_custom_call.1} parent=1 // pred_check
      _
    $region19: #{tpu_custom_call.1} parent=1 // pred_check_branch
      %88 = sbr.rel (0) target = $region21
    $region20: #{tpu_custom_call.1} parent=1 // pred_region
      %90 = vsyncadd [#allocation4], 0
      %s91 = sshll.u32 [#allocation7], 4
      %s92 = int_to_ptr.vmem [resolvable:$true] %s91
      %s93 = sshll.u32 %s2, 4
      %s94 = int_to_ptr.hbm [resolvable:$true] %s93
      %99 = dma.vmem_to_hbm [thread:$0]  %s92, 256, %s94, [#allocation4], 128, 128, 8
    $region21: #{tpu_custom_call.1} parent=1 // pred_fallthru
      _
    // Predicated region
    $region22: #{tpu_custom_call.1} parent=1 // pred_check
      _
    $region23: #{tpu_custom_call.1} parent=1 // pred_check_branch
      %101 = sbr.rel (0) target = $region25
    $region24: #{tpu_custom_call.1} parent=1 // pred_region
      %103 = dma.done [#allocation4], 256
    $region25: #{tpu_custom_call.1} parent=1 // pred_fallthru
      _
    %104 = vsyncpa [#allocation3], 1
    %105 = vsyncpa [#allocation6], 1
    %106 = vsyncpa [#allocation4], 1

</llo_original>
